<compile_context>
chip_gen: v6e
topology: v6e:2x2x1
jax: 0.10.0
libtpu: 0.0.40
codegen_flags: <defaults>
</compile_context>

<pallas_src>
import functools

import jax
import jax.numpy as jnp
from jax import lax
from jax.experimental import pallas as pl
from jax.experimental.pallas import tpu as pltpu


def _fmix32(x):
    """murmur3 finalizer: uint32 -> well-mixed uint32 (pure VALU integer ops)."""
    x = x ^ (x >> jnp.uint32(16))
    x = x * jnp.uint32(0x85EBCA6B)
    x = x ^ (x >> jnp.uint32(13))
    x = x * jnp.uint32(0xC2B2AE35)
    x = x ^ (x >> jnp.uint32(16))
    return x


def _pos_enc_kernel(seed_ref, x_ref, pos_ref, o_ref, *, p, training, n_cols):
    # x_ref/o_ref: (row_tile, col_tile) slab; pos_ref: (1, col_tile), broadcast over rows.
    y = x_ref[...] + pos_ref[...]

    if training and p > 0.0:
        tr, tc = x_ref.shape
        c = pl.program_id(0)   # column tile (flattened seq*d_model axis)
        r = pl.program_id(1)   # batch-row tile
        rows = (r * tr + lax.broadcasted_iota(jnp.int32, (tr, tc), 0)).astype(jnp.uint32)
        cols = (c * tc + lax.broadcasted_iota(jnp.int32, (tr, tc), 1)).astype(jnp.uint32)
        # Global flat element index -> dropout mask independent of grid/tile sizes.
        ctr = rows * jnp.uint32(n_cols) + cols
        seed = seed_ref[0].astype(jnp.uint32)
        bits = _fmix32(ctr * jnp.uint32(0x9E3779B9)
                       + seed * jnp.uint32(0x7FEB352D)
                       + jnp.uint32(1))
        # Raw-bits vs uint32 threshold; keep-prob = 1 - p; scale folded at trace time.
        thresh = jnp.uint32(min(int(round(p * 2.0 ** 32)), 2 ** 32 - 1))
        inv_keep = jnp.float32(1.0 / (1.0 - p))
        y = jnp.where(bits >= thresh, y * inv_keep, jnp.float32(0.0))

    o_ref[...] = y.astype(o_ref.dtype)


def _pick_tiles(B, N, itemsize, target_bytes=2 << 20):
    """Pick (row_tile, col_tile) for the (B, N) slab, respecting the (8,128) rule."""
    if N % 128 == 0:
        col = 128
        while N % (col * 2) == 0 and min(B, 8) * col * 2 * itemsize <= target_bytes:
            col *= 2
    else:
        col = N  # full extent along a dim is always a legal block size
    if B % 8 != 0 or B * col * itemsize <= target_bytes:
        row = B  # full batch is always legal (equals the array dim)
    else:
        row = 8
        while B % (row * 2) == 0 and row * 2 * col * itemsize <= target_bytes:
            row *= 2
    return row, col


def positional_encoding(x, pos_table, seed, *, p=0.1, training=True):
    """x: (B, S, D) float32, pos_table: (max_len, D) float32, seed: int scalar."""
    B, S, D = x.shape
    N = S * D
    # Lane-dense 2-D view: last dim is S*D (a large multiple of 128 whenever possible).
    x2 = x.reshape(B, N)
    pos2 = pos_table[:S, :].reshape(1, N).astype(x.dtype)
    seed_arr = jnp.asarray([seed], dtype=jnp.int32)

    row_tile, col_tile = _pick_tiles(B, N, x.dtype.itemsize)
    n_col_tiles = N // col_tile
    n_row_tiles = B // row_tile

    tile_bytes = row_tile * col_tile * x.dtype.itemsize
    # 2x double-buffered in + out tiles, resident pos tile, plus slack; cap for v7x.
    vmem_limit = int(min(max(4 * tile_bytes + 2 * col_tile * x.dtype.itemsize + (2 << 20),
                             16 << 20),
                         48 << 20))

    kernel = functools.partial(_pos_enc_kernel, p=float(p),
                               training=bool(training), n_cols=N)

    out2 = pl.pallas_call(
        kernel,
        out_shape=jax.ShapeDtypeStruct((B, N), x.dtype),
        grid_spec=pltpu.PrefetchScalarGridSpec(
            num_scalar_prefetch=1,
            # column tiles outer, batch rows inner -> pos block stays resident.
            grid=(n_col_tiles, n_row_tiles),
            in_specs=[
                pl.BlockSpec((row_tile, col_tile), lambda c, r, seed: (r, c)),
                pl.BlockSpec((1, col_tile), lambda c, r, seed: (0, c)),
            ],
            out_specs=pl.BlockSpec((row_tile, col_tile), lambda c, r, seed: (r, c)),
        ),
        compiler_params=pltpu.CompilerParams(
            dimension_semantics=("parallel", "parallel"),
            vmem_limit_bytes=vmem_limit,
        ),
    )(seed_arr, x2, pos2)
    return out2.reshape(B, S, D)


def make_pos_table(d_model, max_len=5000):
    """Exactly mirrors the numpy table in the PyTorch __init__ (raw-i exponent, row 0 zeros)."""
    pos = jnp.arange(max_len, dtype=jnp.float32)[:, None]             # (max_len, 1)
    i = jnp.arange(d_model, dtype=jnp.float32)[None, :]               # (1, d_model)
    angle = pos / jnp.power(jnp.float32(10000.0), 2.0 * i / d_model)  # (max_len, d_model)
    even_cols = (jnp.arange(d_model) % 2 == 0)[None, :]
    table = jnp.where(even_cols, jnp.sin(angle), jnp.cos(angle))
    table = table.at[0].set(0.0)  # pos==0 row stays all-zeros, as in the reference
    return table.astype(jnp.float32)


if __name__ == "__main__":
    B, S, D = 2, 8, 32
    max_len = 64  # module default is 5000; only the first S rows are ever used

    key = jax.random.PRNGKey(0)
    x = jax.random.normal(key, (B, S, D), dtype=jnp.float32)
    pos_table = make_pos_table(D, max_len)

    ref = x + pos_table[:S, :][None, :, :]

    # eval mode (no dropout): exact match against the pure-JAX reference
    out_eval = positional_encoding(x, pos_table, seed=0, p=0.1, training=False)
    jax.block_until_ready(out_eval)
    assert out_eval.shape == (B, S, D)
    assert jnp.allclose(out_eval, ref, atol=1e-6)

    # train mode: every element is either dropped (0) or scaled by 1/(1-p)
    out_train = positional_encoding(x, pos_table, seed=0, p=0.1, training=True)
    jax.block_until_ready(out_train)
    assert out_train.shape == (B, S, D)
    scaled = ref * jnp.float32(1.0 / 0.9)
    ok = jnp.isclose(out_train, scaled, atol=1e-5) | jnp.isclose(out_train, 0.0, atol=1e-7)
    assert bool(jnp.all(ok))
    assert bool(jnp.any(out_train != 0.0))  # p=0.1, so most elements survive

    print("KERNEL_OK")
</pallas_src>

<mosaic_0001>
module attributes {stable_mosaic.version = 11 : i64} {
  func.func @_pos_enc_kernel(%arg0: i32, %arg1: i32, %arg2: memref<1xi32, #tpu.memory_space<smem>>, %arg3: memref<2x256xf32, #tpu.memory_space<vmem>>, %arg4: memref<1x256xf32, #tpu.memory_space<vmem>>, %arg5: memref<2x256xf32, #tpu.memory_space<vmem>>) attributes {dimension_semantics = [#tpu.dimension_semantics<parallel>, #tpu.dimension_semantics<parallel>], iteration_bounds = array<i64: 1, 1>, scalar_prefetch = 1 : i64, scratch_operands = 0 : i64, tpu.core_type = #tpu.core_type<tc>, window_params = [{transform_indices = @transform_0, window_bounds = array<i64: 2, 256>}, {transform_indices = @transform_1, window_bounds = array<i64: 1, 256>}, {transform_indices = @transform_2, window_bounds = array<i64: 2, 256>}]} {
    %c0 = arith.constant 0 : index
    %c0_0 = arith.constant 0 : index
    %0 = vector.load %arg3[%c0, %c0_0] : memref<2x256xf32, #tpu.memory_space<vmem>>, vector<2x256xf32>
    %c0_1 = arith.constant 0 : index
    %c0_2 = arith.constant 0 : index
    %1 = vector.load %arg4[%c0_1, %c0_2] : memref<1x256xf32, #tpu.memory_space<vmem>>, vector<1x256xf32>
    %2 = vector.broadcast %1 : vector<1x256xf32> to vector<2x256xf32>
    %3 = arith.addf %0, %2 : vector<2x256xf32>
    %c0_3 = arith.constant 0 : index
    %c0_4 = arith.constant 0 : index
    %4 = vector.load %arg5[%c0_3, %c0_4] : memref<2x256xf32, #tpu.memory_space<vmem>>, vector<2x256xf32>
    tpu.vector_store %arg5[%c0_3, %c0_4], %3 {strides = array<i32>} : memref<2x256xf32, #tpu.memory_space<vmem>>, vector<2x256xf32>,
    return
  }
  func.func @transform_0(%arg0: i32, %arg1: i32, %arg2: memref<1xi32, #tpu.memory_space<smem>>) -> (i32, i32) {
    %c0_i32 = arith.constant 0 : i32
    return %arg1, %arg0 : i32, i32
  }
  func.func @transform_1(%arg0: i32, %arg1: i32, %arg2: memref<1xi32, #tpu.memory_space<smem>>) -> (i32, i32) {
    %c0_i32 = arith.constant 0 : i32
    %c0_i32_0 = arith.constant 0 : i32
    return %c0_i32, %arg0 : i32, i32
  }
  func.func @transform_2(%arg0: i32, %arg1: i32, %arg2: memref<1xi32, #tpu.memory_space<smem>>) -> (i32, i32) {
    %c0_i32 = arith.constant 0 : i32
    return %arg1, %arg0 : i32, i32
  }
}

</mosaic_0001>

<llo_original>
// kernel: tpu_custom_call.1
$region0: #{tpu_custom_call.1}
  #allocation0 [shape = 'u32[]', space=smem, size = 0x4, offset = 0x4, fixed_abs, tag = 'smem constant byte address 0x4 - core index']
  #allocation1 [shape = 'u32[144,128]{1,0:T(1,128)}', space=vmem, size = 0x12000, scoped, tag = 'internal scratch']
  #allocation2 [shape = 's32[1]{0}', space=sflag, size = 0x4, scoped, tag = 'scoped memory for tpu_custom_call.1']
  #allocation3 [shape = 's32[1]{0:T(128)S(6)}', space=smem, size = 0x200, scoped, tag = 'prefetched SMEM operand 0']
  %s0 = inlined_call_operand.<no memory space> [shape: s32[1], index: 0, kind: input, shape index: {}]
  %s1 = inlined_call_operand.hbm [shape: f32[2,256], index: 1, kind: input, shape index: {}]
  %s2 = inlined_call_operand.vmem [shape: f32[1,256], index: 2, kind: input, shape index: {}]
  %s3 = inlined_call_operand.hbm [shape: f32[2,256], index: 3, kind: output, shape index: {}]
  %s4 = sld [smem:[#allocation0]]
  $region22: #{tpu_custom_call.1} parent=0
    _
  %s6 = ssub.s32 1, %s4
  %s7 = scalar_select 0, %s6, %s4
  %8 = sst [smem:[#allocation3]] %s0
  $region1: #{tpu_custom_call.1} parent=0
    #allocation4 [shape = 'u8[2048]{0}', space=vmem, size = 0x800, scoped, tag = 'input window, operand 1, single buffered']
    #allocation5 [shape = 's32[1]{0}', space=sflag, size = 0x4, scoped, tag = 'scoped memory for tpu_custom_call.1']
    #allocation6 [shape = 's32[1]{0}', space=sflag, size = 0x4, scoped, tag = 'scoped memory for tpu_custom_call.1']
    #allocation7 [shape = 'u8[2048]{0}', space=vmem, size = 0x800, scoped, tag = 'output window, operand 0, single buffered']
    %9 = vsyncpa [#allocation5], 0
    %10 = vsyncpa [#allocation6], 0
    // Predicated region
    $region2: #{tpu_custom_call.1} parent=1 // pred_check
      _
    $region3: #{tpu_custom_call.1} parent=1 // pred_check_branch
      %12 = sbr.rel (0) target = $region5
    $region4: #{tpu_custom_call.1} parent=1 // pred_region
      %s14 = ssub.s32 64, 64
      %15 = vsyncadd [#allocation5], %s14
      %s17 = sshll.u32 [#allocation4], 4
      %s18 = int_to_ptr.vmem [resolvable:$true] %s17
      %20 = dma.hbm_to_vmem [thread:$0]  %s1, 64, %s18, [#allocation5]
    $region5: #{tpu_custom_call.1} parent=1 // pred_fallthru
      _
    // Predicated region
    $region6: #{tpu_custom_call.1} parent=1 // pred_check
      _
    $region7: #{tpu_custom_call.1} parent=1 // pred_check_branch
      %22 = sbr.rel (0) target = $region9
    $region8: #{tpu_custom_call.1} parent=1 // pred_region
      _
    $region9: #{tpu_custom_call.1} parent=1 // pred_fallthru
      _
    // Predicated region
    $region10: #{tpu_custom_call.1} parent=1 // pred_check
      _
    $region11: #{tpu_custom_call.1} parent=1 // pred_check_branch
      %24 = sbr.rel (0) target = $region13
    $region12: #{tpu_custom_call.1} parent=1 // pred_region
      %25 = dma.done [#allocation5], 64
    $region13: #{tpu_custom_call.1} parent=1 // pred_fallthru
      _
    %v26 = vld [vmem:[#allocation4] sm:$0xf]
    %v27 = vld [vmem:[%s2] sm:$0x3]
    %v29 = vlaneseq
    %v30 = vshrl.u32 %v29, 7
    %v31 = vsub.s32 0, %v30
    %v32 = vrot.slane %v27, %v31
    %v33 = vlaneseq
    %v34 = vshrl.u32 %v33, 7
    %v35 = vsub.s32 1, %v34
    %v36 = vrot.slane %v27, %v35
    %v37 = vcombine.low %v32, %v36
    %v39 = vunpack.c.l.s4 1983009808
    %v40 = vunpack.c.0.s8 %v39
    %v41 = vlaneseq
    %v42 = vshrl.u32 %v41, 7
    %v43 = vsub.s32 %v40, %v42
    %v44 = vrot.slane %v37, %v43
    %v46 = vadd.f32 %v26, %v44
    %47 = vst [vmem:[#allocation7] sm:$0xf] %v46
    // Predicated region
    $region14: #{tpu_custom_call.1} parent=1 // pred_check
      _
    $region15: #{tpu_custom_call.1} parent=1 // pred_check_branch
      %49 = sbr.rel (0) target = $region17
    $region16: #{tpu_custom_call.1} parent=1 // pred_region
      %s51 = ssub.s32 64, 64
      %52 = vsyncadd [#allocation6], %s51
      %s54 = sshll.u32 [#allocation7], 4
      %s55 = int_to_ptr.vmem [resolvable:$true] %s54
      %57 = dma.vmem_to_hbm [thread:$0]  %s55, 64, %s3, [#allocation6]
    $region17: #{tpu_custom_call.1} parent=1 // pred_fallthru
      _
    // Predicated region
    $region18: #{tpu_custom_call.1} parent=1 // pred_check
      _
    $region19: #{tpu_custom_call.1} parent=1 // pred_check_branch
      %59 = sbr.rel (0) target = $region21
    $region20: #{tpu_custom_call.1} parent=1 // pred_region
      %60 = dma.done [#allocation6], 64
    $region21: #{tpu_custom_call.1} parent=1 // pred_fallthru
      _
    %61 = vsyncpa [#allocation5], 1
    %62 = vsyncpa [#allocation6], 1

</llo_original>
